<compile_context>
chip_gen: v7x
topology: tpu7x:2x2x1
jax: 0.10.0
libtpu: 0.0.40
codegen_flags: <defaults>
</compile_context>

<pallas_src>
import jax
import jax.numpy as jnp
from jax import lax
from jax.experimental import pallas as pl
from jax.experimental.pallas import tpu as pltpu

LANES = 128


def _round_up(x, m):
    return (x + m - 1) // m * m


# ----------------------------------------------------------------------------
# MaxPool2d(kernel_size=3, stride=2, padding=1), stride-2 output computed
# directly in-kernel.  The wrapper reshapes (N, H, W, C) -> (N, H, W//2, 2C)
# (a free, row-major reshape) so even/odd input columns are adjacent lane
# groups inside the kernel.  No VMEM scratch: the -1 column/row shifts stay
# in vregs.  Output is bf16 (feeds the bf16 residual blocks).
# ----------------------------------------------------------------------------
def _maxpool_s2_kernel(xr_ref, o_ref):
    # xr_ref: (1, H, Wo, 2C) f32   (even/odd input columns folded into lanes)
    # o_ref : (1, Ho, Wo, C)  bf16
    _, Ho, Wo, C = o_ref.shape
    H = 2 * Ho
    xr = xr_ref[0]                                     # (H, Wo, 2C) f32

    col_e = xr[:, :, 0:C]                              # input column 2*wo
    col_o = xr[:, :, C:2 * C]                          # input column 2*wo + 1
    # input column 2*wo - 1 == col_o shifted right by one output column, with
    # -inf (the pool's padding value) entering at wo == 0.  Built in vregs.
    neg_c = jnp.full((H, 1, C), -jnp.inf, xr.dtype)
    col_m = jnp.concatenate([neg_c, col_o[:, :Wo - 1, :]], axis=1)
    h = jnp.maximum(jnp.maximum(col_e, col_o), col_m)  # (H, Wo, C)

    # rows {2*ho - 1, 2*ho, 2*ho + 1}
    h4 = h.reshape(Ho, 2, Wo, C)                       # splits leading dim only
    row_e = h4[:, 0]                                   # input row 2*ho
    row_o = h4[:, 1]                                   # input row 2*ho + 1
    neg_r = jnp.full((1, Wo, C), -jnp.inf, xr.dtype)
    row_m = jnp.concatenate([neg_r, row_o[:Ho - 1]], axis=0)   # row 2*ho - 1

    out = jnp.maximum(jnp.maximum(row_e, row_o), row_m)
    o_ref[0] = out.astype(o_ref.dtype)


def maxpool2d_3x3_s2_p1(x):
    """x: NHWC f32, C a multiple of 128, H and W even.  Returns bf16 NHWC."""
    N, H, W, C = x.shape
    assert H % 2 == 0 and W % 2 == 0 and C % LANES == 0
    Ho, Wo = H // 2, W // 2
    xr = x.reshape(N, H, Wo, 2 * C)        # free reshape, no data movement
    return pl.pallas_call(
        _maxpool_s2_kernel,
        out_shape=jax.ShapeDtypeStruct((N, Ho, Wo, C), jnp.bfloat16),
        grid=(N,),
        in_specs=[pl.BlockSpec((1, H, Wo, 2 * C), lambda n: (n, 0, 0, 0))],
        out_specs=pl.BlockSpec((1, Ho, Wo, C), lambda n: (n, 0, 0, 0)),
        compiler_params=pltpu.CompilerParams(dimension_semantics=("parallel",)),
    )(xr)


# ----------------------------------------------------------------------------
# Fused BasicBlock:  relu( conv2(relu(conv1(x)*s1+b1))*s2+b2 + x )
# BN scales pre-folded into the bf16 weights (stored tap-major: (9, C, C)).
# Each conv = 9 accumulating (H*W, C) x (C, C) MXU matmuls reading shifted
# windows of a bf16 zero-halo VMEM buffer; f32 accumulation, no im2col patch.
# ----------------------------------------------------------------------------
def _basic_block_kernel(x_ref, w1_ref, b1_ref, w2_ref, b2_ref, o_ref, xpad_ref):
    # x_ref/o_ref: (1, H, W, C) bf16      w*_ref: (9, C, C) bf16
    # b*_ref    : (1, C) f32
    # xpad_ref  : VMEM (H+2, Wp, C) bf16  zero-halo activation buffer
    _, H, W, C = x_ref.shape
    Wp = xpad_ref.shape[1]
    x_bf = x_ref[0]                                    # (H, W, C) bf16 residual

    # Zero only the 1-pixel halo border (the interior is fully rewritten
    # before each conv's tap reads; columns >= W+2 are never read).
    zrow = jnp.zeros((1, Wp, C), xpad_ref.dtype)
    xpad_ref[0:1] = zrow
    xpad_ref[H + 1:H + 2] = zrow
    zcol = jnp.zeros((H, 1, C), xpad_ref.dtype)
    xpad_ref[1:H + 1, 0:1, :] = zcol
    xpad_ref[1:H + 1, W + 1:W + 2, :] = zcol

    def conv3x3(v_bf, w_ref, b_ref):
        # v_bf: (H, W, C) bf16 (cast to bf16 exactly once by the caller)
        xpad_ref[1:H + 1, 1:W + 1, :] = v_bf
        acc = jnp.zeros((H * W, C), jnp.float32)
        for dy in range(3):
            for dx in range(3):
                tap = xpad_ref[dy:dy + H, dx:dx + W, :].reshape(H * W, C)
                acc = acc + jnp.dot(tap, w_ref[dy * 3 + dx],
                                    preferred_element_type=jnp.float32)
        return acc + b_ref[...]                        # (H*W, C) f32

    y = jnp.maximum(conv3x3(x_bf, w1_ref, b1_ref), 0.0)
    y_bf = y.astype(jnp.bfloat16).reshape(H, W, C)

    z = conv3x3(y_bf, w2_ref, b2_ref)
    z = jnp.maximum(z + x_bf.reshape(H * W, C).astype(jnp.float32), 0.0)
    o_ref[0] = z.reshape(H, W, C).astype(o_ref.dtype)


def basic_block(x, w1_t, b1, w2_t, b2):
    """x: (N, H, W, C) bf16; w*_t: (9, C, C) bf16; b*: (1, C) f32."""
    N, H, W, C = x.shape
    assert C % LANES == 0 and W % 8 == 0
    Wp = _round_up(W + 2, 16)            # sublane-tile-aligned row stride

    # Explicit scoped-VMEM budget (v5e defaults to 16 MiB).
    est = (2 * 2 * H * W * C * 2         # in + out blocks, double buffered
           + 2 * 2 * 9 * C * C * 2       # both weight tensors, double buffered
           + (H + 2) * Wp * C * 2        # zero-halo scratch
           + 6 * H * W * C * 4)          # f32 accumulators / temporaries
    vmem_limit = int(min(max(2 * est, 32 * 1024 * 1024), 64 * 1024 * 1024))

    return pl.pallas_call(
        _basic_block_kernel,
        out_shape=jax.ShapeDtypeStruct((N, H, W, C), jnp.bfloat16),
        grid=(N,),
        in_specs=[
            pl.BlockSpec((1, H, W, C), lambda n: (n, 0, 0, 0)),
            pl.BlockSpec((9, C, C), lambda n: (0, 0, 0)),
            pl.BlockSpec((1, C), lambda n: (0, 0)),
            pl.BlockSpec((9, C, C), lambda n: (0, 0, 0)),
            pl.BlockSpec((1, C), lambda n: (0, 0)),
        ],
        out_specs=pl.BlockSpec((1, H, W, C), lambda n: (n, 0, 0, 0)),
        scratch_shapes=[pltpu.VMEM((H + 2, Wp, C), jnp.bfloat16)],
        compiler_params=pltpu.CompilerParams(
            dimension_semantics=("parallel",),
            vmem_limit_bytes=vmem_limit),
    )(x, w1_t, b1, w2_t, b2)


# ----------------------------------------------------------------------------
# Parameter init (deterministic, synthetic) and offline BN folding / padding
# ----------------------------------------------------------------------------
def _init_block_params(key, C):
    k = jax.random.split(key, 10)
    std = (2.0 / (9 * C)) ** 0.5
    w1 = std * jax.random.normal(k[0], (3, 3, C, C), jnp.float32)   # HWIO
    w2 = std * jax.random.normal(k[1], (3, 3, C, C), jnp.float32)

    def fold_bn(kg, kb, km, kv):
        gamma = 1.0 + 0.1 * jax.random.normal(kg, (C,), jnp.float32)
        beta = 0.1 * jax.random.normal(kb, (C,), jnp.float32)
        mean = 0.1 * jax.random.normal(km, (C,), jnp.float32)
        var = jax.random.uniform(kv, (C,), jnp.float32, minval=0.5, maxval=1.5)
        scale = gamma * lax.rsqrt(var + 1e-5)
        return scale, beta - mean * scale

    s1, b1 = fold_bn(k[2], k[3], k[4], k[5])
    s2, b2 = fold_bn(k[6], k[7], k[8], k[9])
    return dict(w1=w1, s1=s1, b1=b1, w2=w2, s2=s2, b2=b2)


def _prepare_conv(w, scale, bias, C, Cp):
    """Fold BN scale into the weights, zero-pad channels to the lane width,
    cast to bf16 and pre-reshape into tap-major (9, Cp, Cp) form."""
    wf = w * scale[None, None, None, :]                          # (3,3,C,C) f32
    wp = jnp.zeros((3, 3, Cp, Cp), jnp.float32)
    wp = wp.at[:, :, :C, :C].set(wf).astype(jnp.bfloat16)        # (3,3,Cp,Cp)
    bp = jnp.zeros((Cp,), jnp.float32).at[:C].set(bias)
    return dict(w4=wp,                         # reference path (HWIO conv)
                wt=wp.reshape(9, Cp, Cp),      # kernel path (per-tap matmuls)
                b=bp.reshape(1, Cp))


class Conv2Pallas:
    """Pallas port of Conv2 (BasicBlock resblocks, identity shortcut)."""

    def __init__(self, nblocks, block_name, mapping, in_channels, out_channels,
                 *, key):
        assert block_name == "BasicBlock"
        assert in_channels == out_channels, "identity shortcut requires in==out"
        # TODO(synk): `mapping` semantics live in models/blocks.py (unavailable);
        # it is accepted but unused here.
        del mapping
        self.C = out_channels
        self.Cp = _round_up(out_channels, LANES)   # lane-dense channel padding
        self.use_maxpool = (len(nblocks) == 4)
        self.blocks = []
        for _ in range(nblocks[0]):
            key, sub = jax.random.split(key)
            raw = _init_block_params(sub, out_channels)
            self.blocks.append(dict(
                c1=_prepare_conv(raw["w1"], raw["s1"], raw["b1"], self.C, self.Cp),
                c2=_prepare_conv(raw["w2"], raw["s2"], raw["b2"], self.C, self.Cp)))

    def __call__(self, x_nchw):
        x = jnp.transpose(x_nchw, (0, 2, 3, 1))                 # NCHW -> NHWC
        x = jnp.pad(x, ((0, 0), (0, 0), (0, 0), (0, self.Cp - self.C)))
        if self.use_maxpool:
            x = maxpool2d_3x3_s2_p1(x)                          # f32 in, bf16 out
        else:
            x = x.astype(jnp.bfloat16)
        for blk in self.blocks:
            x = basic_block(x, blk["c1"]["wt"], blk["c1"]["b"],
                            blk["c2"]["wt"], blk["c2"]["b"])
        return jnp.transpose(x[..., :self.C].astype(jnp.float32),
                             (0, 3, 1, 2))                      # NHWC -> NCHW


# ----------------------------------------------------------------------------
# Pure-JAX reference (same bf16-activation / f32-accumulation regime)
# ----------------------------------------------------------------------------
def reference_forward(x_nchw, model):
    x = jnp.transpose(x_nchw, (0, 2, 3, 1))
    C = model.C
    x = jnp.pad(x, ((0, 0), (0, 0), (0, 0), (0, model.Cp - C)))
    if model.use_maxpool:
        x = lax.reduce_window(x, -jnp.inf, lax.max, (1, 3, 3, 1), (1, 2, 2, 1),
                              ((0, 0), (1, 1), (1, 1), (0, 0)))
    x = x.astype(jnp.bfloat16)

    def conv(z_bf, p):
        y = lax.conv_general_dilated(
            z_bf, p["w4"], (1, 1), ((1, 1), (1, 1)),
            dimension_numbers=("NHWC", "HWIO", "NHWC"),
            preferred_element_type=jnp.float32)
        return y + p["b"]

    for blk in model.blocks:
        y = jnp.maximum(conv(x, blk["c1"]), 0.0).astype(jnp.bfloat16)
        z = jnp.maximum(conv(y, blk["c2"]) + x.astype(jnp.float32), 0.0)
        x = z.astype(jnp.bfloat16)
    return jnp.transpose(x[..., :C].astype(jnp.float32), (0, 3, 1, 2))


if __name__ == "__main__":
    key = jax.random.PRNGKey(0)
    kx, kp = jax.random.split(key)

    # PyTorch-style NCHW input: batch=2, channels=8, spatial 32x32
    x = jax.random.normal(kx, (2, 8, 32, 32), jnp.float32)

    model = Conv2Pallas(nblocks=[2, 2, 2, 2], block_name="BasicBlock",
                        mapping=None, in_channels=8, out_channels=8, key=kp)

    out = jax.block_until_ready(model(x))
    assert out.shape == (2, 8, 16, 16), out.shape   # maxpool halves spatial dims

    ref = jax.block_until_ready(reference_forward(x, model))
    err = float(jnp.max(jnp.abs(out - ref)))
    tol = 5e-2 * (1.0 + float(jnp.max(jnp.abs(ref))))   # bf16-I/O-aware tolerance
    assert err < tol, f"max abs err {err} (tol {tol})"

    print("KERNEL_OK")
</pallas_src>

<mosaic_0001>
module attributes {stable_mosaic.version = 11 : i64} {
  func.func @_maxpool_s2_kernel(%arg0: i32, %arg1: memref<1x32x16x256xf32, #tpu.memory_space<vmem>>, %arg2: memref<1x16x16x128xbf16, #tpu.memory_space<vmem>>) attributes {dimension_semantics = [#tpu.dimension_semantics<parallel>], iteration_bounds = array<i64: 2>, scalar_prefetch = 0 : i64, scratch_operands = 0 : i64, tpu.core_type = #tpu.core_type<tc>, window_params = [{transform_indices = @transform_0, window_bounds = array<i64: 1, 32, 16, 256>}, {transform_indices = @transform_1, window_bounds = array<i64: 1, 16, 16, 128>}]} {
    %c0 = arith.constant 0 : index
    %c0_0 = arith.constant 0 : index
    %c0_1 = arith.constant 0 : index
    %c0_2 = arith.constant 0 : index
    %0 = vector.load %arg1[%c0, %c0_0, %c0_1, %c0_2] : memref<1x32x16x256xf32, #tpu.memory_space<vmem>>, vector<1x32x16x256xf32>
    %1 = vector.shape_cast %0 : vector<1x32x16x256xf32> to vector<32x16x256xf32>
    %2 = vector.extract_strided_slice %1 {offsets = [0, 0, 0], sizes = [32, 16, 128], strides = [1, 1, 1]} : vector<32x16x256xf32> to vector<32x16x128xf32>
    %3 = vector.extract_strided_slice %1 {offsets = [0, 0, 128], sizes = [32, 16, 128], strides = [1, 1, 1]} : vector<32x16x256xf32> to vector<32x16x128xf32>
    %cst = arith.constant 0xFF800000 : f32
    %4 = vector.broadcast %cst : f32 to vector<32x1x128xf32>
    %5 = vector.extract_strided_slice %3 {offsets = [0, 0, 0], sizes = [32, 15, 128], strides = [1, 1, 1]} : vector<32x16x128xf32> to vector<32x15x128xf32>
    %6 = tpu.concatenate %4, %5 in 1 : vector<32x1x128xf32>, vector<32x15x128xf32> -> vector<32x16x128xf32>
    %7 = arith.maximumf %2, %3 : vector<32x16x128xf32>
    %8 = arith.maximumf %7, %6 : vector<32x16x128xf32>
    %9 = vector.shape_cast %8 : vector<32x16x128xf32> to vector<16x2x16x128xf32>
    %10 = vector.extract_strided_slice %9 {offsets = [0, 0, 0, 0], sizes = [16, 1, 16, 128], strides = [1, 1, 1, 1]} : vector<16x2x16x128xf32> to vector<16x1x16x128xf32>
    %11 = vector.shape_cast %10 : vector<16x1x16x128xf32> to vector<16x16x128xf32>
    %12 = vector.extract_strided_slice %9 {offsets = [0, 1, 0, 0], sizes = [16, 1, 16, 128], strides = [1, 1, 1, 1]} : vector<16x2x16x128xf32> to vector<16x1x16x128xf32>
    %13 = vector.shape_cast %12 : vector<16x1x16x128xf32> to vector<16x16x128xf32>
    %cst_3 = arith.constant 0xFF800000 : f32
    %14 = vector.broadcast %cst_3 : f32 to vector<1x16x128xf32>
    %15 = vector.extract_strided_slice %13 {offsets = [0, 0, 0], sizes = [15, 16, 128], strides = [1, 1, 1]} : vector<16x16x128xf32> to vector<15x16x128xf32>
    %16 = tpu.concatenate %14, %15 in 0 : vector<1x16x128xf32>, vector<15x16x128xf32> -> vector<16x16x128xf32>
    %17 = arith.maximumf %11, %13 : vector<16x16x128xf32>
    %18 = arith.maximumf %17, %16 : vector<16x16x128xf32>
    %19 = arith.truncf %18 : vector<16x16x128xf32> to vector<16x16x128xbf16>
    %c0_4 = arith.constant 0 : index
    %c0_5 = arith.constant 0 : index
    %c0_6 = arith.constant 0 : index
    %c0_7 = arith.constant 0 : index
    %20 = vector.load %arg2[%c0_4, %c0_5, %c0_6, %c0_7] : memref<1x16x16x128xbf16, #tpu.memory_space<vmem>>, vector<1x16x16x128xbf16>
    %21 = vector.shape_cast %20 : vector<1x16x16x128xbf16> to vector<16x16x128xbf16>
    %22 = vector.shape_cast %19 : vector<16x16x128xbf16> to vector<1x16x16x128xbf16>
    tpu.vector_store %arg2[%c0_4, %c0_5, %c0_6, %c0_7], %22 {strides = array<i32>} : memref<1x16x16x128xbf16, #tpu.memory_space<vmem>>, vector<1x16x16x128xbf16>,
    return
  }
  func.func @transform_0(%arg0: i32) -> (i32, i32, i32, i32) {
    %c0_i32 = arith.constant 0 : i32
    %c0_i32_0 = arith.constant 0 : i32
    %c0_i32_1 = arith.constant 0 : i32
    %c0_i32_2 = arith.constant 0 : i32
    return %arg0, %c0_i32, %c0_i32_0, %c0_i32_1 : i32, i32, i32, i32
  }
  func.func @transform_1(%arg0: i32) -> (i32, i32, i32, i32) {
    %c0_i32 = arith.constant 0 : i32
    %c0_i32_0 = arith.constant 0 : i32
    %c0_i32_1 = arith.constant 0 : i32
    %c0_i32_2 = arith.constant 0 : i32
    return %arg0, %c0_i32, %c0_i32_0, %c0_i32_1 : i32, i32, i32, i32
  }
}

</mosaic_0001>

<llo_original>
// kernel: tpu_custom_call.1
$region0: #{tpu_custom_call.1}
  #allocation0 [shape = 'u32[]', space=smem, size = 0x4, offset = 0x4, fixed_abs, tag = 'smem constant byte address 0x4 - core index']
  #allocation1 [shape = 'u32[144,128]{1,0:T(1,128)}', space=vmem, size = 0x12000, scoped, tag = 'internal scratch']
  %s0 = inlined_call_operand.hbm [shape: f32[2,32,16,256], index: 0, kind: input, shape index: {}]
  %s1 = inlined_call_operand.hbm [shape: bf16[2,16,16,128], index: 1, kind: output, shape index: {}]
  %s2 = sld [smem:[#allocation0]]
  $region41: #{tpu_custom_call.1} parent=0
    _
  %s4 = ssub.s32 1, %s2
  %s5 = scalar_select 0, %s4, %s2
  $region1: #{tpu_custom_call.1} parent=0
    #allocation2 [shape = 'u8[1048576]{0}', space=vmem, size = 0x100000, scoped, tag = 'input window, operand 0']
    #allocation3 [shape = 's32[2]{0}', space=sflag, size = 0x8, scoped, tag = 'scoped memory for tpu_custom_call.1']
    #allocation4 [shape = 's32[2]{0}', space=sflag, size = 0x8, scoped, tag = 'scoped memory for tpu_custom_call.1']
    #allocation5 [shape = 'u8[131072]{0}', space=vmem, size = 0x20000, scoped, tag = 'output window, operand 0']
    %6 = vsyncpa [#allocation3], 0
    %s7 = scalar_lea.sflag [#allocation3], 1
    %8 = vsyncpa %s7, 0
    %9 = vsyncpa [#allocation4], 0
    %s10 = scalar_lea.sflag [#allocation4], 1
    %11 = vsyncpa %s10, 0
    loop: start=0, step=1, limit=4
    $region2: #{tpu_custom_call.1} parent=1 // loop_pre_header
      _
    $region3: #{tpu_custom_call.1} parent=1 // loop_header
      %s13 = sphi 0, %s17
      %p14 = scmp.ge.s32.totalorder %s13, 4
      %s23 = sphi 0, %s25
      %s26 = sphi 0, %s23
      %s27 = sphi 0, %s26
      %s43 = sphi 0, %s27
      %s49 = sphi 0, %s51
      %s52 = sphi 0, %s49
      %s53 = sphi 0, %s52
      %s69 = sphi 0, %s53
    $region4: #{tpu_custom_call.1} parent=1 // loop_header_branch
      %16 = sbr.rel (%p14) target = $region8
    $region5: #{tpu_custom_call.1} parent=1 // loop_body
      %s18 = ssub.s32 %s13, 1
      %s19 = ssub.s32 %s13, 2
      %s20 = sadd.s32 %s13, 1
      %s21 = ssub.s32 %s13, %s20
      %p22 = scmp.eq.s32.totalorder %s21, 0
      %s24 = sadd.s32 %s23, 1
      %s25 = scalar_select %p22, %s23, %s24
      %p28 = pneg %p22
      %p29 = scmp.eq.s32.totalorder %s13, 1
      %p30 = por %p28, %p29
      %p31 = scmp.ne.s32.totalorder %s23, %s26
      %p32 = scmp.eq.s32.totalorder %s13, 0
      %p33 = por %p31, %p32
      %p34 = scmp.ne.s32.totalorder %s23, %s26
      %p35 = scmp.eq.s32.totalorder %s18, 1
      %p36 = por %p34, %p35
      %p37 = scmp.ne.s32.totalorder %s26, %s27
      %p38 = scmp.eq.s32.totalorder %s18, 0
      %p39 = por %p37, %p38
      %p40 = scmp.ne.s32.totalorder %s26, %s27
      %p41 = scmp.eq.s32.totalorder %s19, 1
      %p42 = por %p40, %p41
      %p44 = scmp.ne.s32.totalorder %s27, %s43
      %p45 = scmp.eq.s32.totalorder %s19, 0
      %p46 = por %p44, %p45
      %s47 = ssub.s32 %s13, %s20
      %p48 = scmp.eq.s32.totalorder %s47, 0
      %s50 = sadd.s32 %s49, 1
      %s51 = scalar_select %p48, %s49, %s50
      %p54 = pneg %p48
      %p55 = scmp.eq.s32.totalorder %s13, 1
      %p56 = por %p54, %p55
      %p57 = scmp.ne.s32.totalorder %s49, %s52
      %p58 = scmp.eq.s32.totalorder %s13, 0
      %p59 = por %p57, %p58
      %p60 = scmp.ne.s32.totalorder %s49, %s52
      %p61 = scmp.eq.s32.totalorder %s18, 1
      %p62 = por %p60, %p61
      %p63 = scmp.ne.s32.totalorder %s52, %s53
      %p64 = scmp.eq.s32.totalorder %s18, 0
      %p65 = por %p63, %p64
      %p66 = scmp.ne.s32.totalorder %s52, %s53
      %p67 = scmp.eq.s32.totalorder %s19, 1
      %p68 = por %p66, %p67
      %p70 = scmp.ne.s32.totalorder %s53, %s69
      %p71 = scmp.eq.s32.totalorder %s19, 0
      %p72 = por %p70, %p71
      %p73 = scmp.le.s32.totalorder 1, %s13
      %p74 = scmp.lt.s32.totalorder %s13, 3
      %p75 = pnand %p73, %p74
      %p76 = pneg %p75
      // Predicated region
      $region9: #{tpu_custom_call.1} parent=5 // pred_check
        _
      $region10: #{tpu_custom_call.1} parent=5 // pred_check_branch
        %78 = sbr.rel (%p75) target = $region12
      $region11: #{tpu_custom_call.1} parent=5 // pred_region
        %s79 = ssub.s32 %s13, 1
      $region12: #{tpu_custom_call.1} parent=5 // pred_fallthru
        _
      %p80 = scmp.lt.s32.totalorder %s13, 2
      // Predicated region
      $region13: #{tpu_custom_call.1} parent=5 // pred_check
        %p81 = pneg %p80
      $region14: #{tpu_custom_call.1} parent=5 // pred_check_branch
        %83 = sbr.rel (%p81) target = $region16
      $region15: #{tpu_custom_call.1} parent=5 // pred_region
        // Predicated region
        $region17: #{tpu_custom_call.1} parent=15 // pred_check
          %p84 = pneg %p33
        $region18: #{tpu_custom_call.1} parent=15 // pred_check_branch
          %86 = sbr.rel (%p84) target = $region20
        $region19: #{tpu_custom_call.1} parent=15 // pred_region
          %s87 = sand.u32 %s23, 1
          %s88 = scalar_lea.sflag [#allocation3], %s87
          %s89 = sand.u32 %s23, 1
          %s90 = smul.addr %s89, 1024
          %s91 = scalar_lea.vmem [#allocation2], %s90
          %s93 = ssub.s32 16384, 16384
          %94 = vsyncadd %s88, %s93
          %s95 = smul.addr %s13, 128
          %s96 = smul.addr %s95, 128
          %s97 = scalar_lea.hbm %s0, %s96
          %s98 = sshll.u32 %s91, 4
          %s99 = int_to_ptr.vmem [resolvable:$true] %s98
          %104 = dma.hbm_to_vmem [thread:$0]  %s97, 16384, %s99, %s88, 256, 256, 16
        $region20: #{tpu_custom_call.1} parent=15 // pred_fallthru
          _
      $region16: #{tpu_custom_call.1} parent=5 // pred_fallthru
        _
      %p105 = scmp.le.s32.totalorder 1, %s13
      %p106 = scmp.lt.s32.totalorder %s13, 3
      %p107 = pnand %p105, %p106
      %p108 = pneg %p107
      // Predicated region
      $region21: #{tpu_custom_call.1} parent=5 // pred_check
        _
      $region22: #{tpu_custom_call.1} parent=5 // pred_check_branch
        %110 = sbr.rel (%p107) target = $region24
      $region23: #{tpu_custom_call.1} parent=5 // pred_region
        %s111 = ssub.s32 %s13, 1
        %s112 = sand.u32 %s26, 1
        %s113 = scalar_lea.sflag [#allocation3], %s112
        %s114 = sand.u32 %s26, 1
        %s115 = smul.addr %s114, 1024
        %s116 = scalar_lea.vmem [#allocation2], %s115
        // Predicated region
        $region25: #{tpu_custom_call.1} parent=23 // pred_check
          %p117 = pneg %p39
        $region26: #{tpu_custom_call.1} parent=23 // pred_check_branch
          %119 = sbr.rel (%p117) target = $region28
        $region27: #{tpu_custom_call.1} parent=23 // pred_region
          %120 = dma.done %s113, 16384
        $region28: #{tpu_custom_call.1} parent=23 // pred_fallthru
          _
        %s121 = sand.u32 %s26, 1
        %s122 = scalar_lea.sflag [#allocation3], %s121
        %s123 = sand.u32 %s26, 1
        %s124 = smul.addr %s123, 1024
        %s125 = scalar_lea.vmem [#allocation2], %s124
        %p126 = pneg %p39
        %p127 = pneg %p36
        %p128 = pneg %p65
        %p129 = pneg %p62
        %s130 = sand.u32 %s52, 1
        %s131 = scalar_lea.sflag [#allocation4], %s130
        %s132 = sand.u32 %s52, 1
        %s133 = smul.addr %s132, 128
        %s134 = scalar_lea.vmem [#allocation5], %s133
        %v135 = vld [vmem:[%s116] sm:$0xff]
        %v136 = vld [vmem:[%s116 + $0x8] sm:$0xff]
        %v137 = vld [vmem:[%s116 + $0x10] sm:$0xff]
        %v138 = vld [vmem:[%s116 + $0x18] sm:$0xff]
        %v139 = vld [vmem:[%s116 + $0x20] sm:$0xff]
        %v140 = vld [vmem:[%s116 + $0x28] sm:$0xff]
        %v141 = vld [vmem:[%s116 + $0x30] sm:$0xff]
        %v142 = vld [vmem:[%s116 + $0x38] sm:$0xff]
        %v143 = vld [vmem:[%s116 + $0x40] sm:$0xff]
        %v144 = vld [vmem:[%s116 + $0x48] sm:$0xff]
        %v145 = vld [vmem:[%s116 + $0x50] sm:$0xff]
        %v146 = vld [vmem:[%s116 + $0x58] sm:$0xff]
        %v147 = vld [vmem:[%s116 + $0x60] sm:$0xff]
        %v148 = vld [vmem:[%s116 + $0x68] sm:$0xff]
        %v149 = vld [vmem:[%s116 + $0x70] sm:$0xff]
        %v150 = vld [vmem:[%s116 + $0x78] sm:$0xff]
        %v151 = vld [vmem:[%s116 + $0x80] sm:$0xff]
        %v152 = vld [vmem:[%s116 + $0x88] sm:$0xff]
        %v153 = vld [vmem:[%s116 + $0x90] sm:$0xff]
        %v154 = vld [vmem:[%s116 + $0x98] sm:$0xff]
        %v155 = vld [vmem:[%s116 + $0xa0] sm:$0xff]
        %v156 = vld [vmem:[%s116 + $0xa8] sm:$0xff]
        %v157 = vld [vmem:[%s116 + $0xb0] sm:$0xff]
        %v158 = vld [vmem:[%s116 + $0xb8] sm:$0xff]
        %v159 = vld [vmem:[%s116 + $0xc0] sm:$0xff]
        %v160 = vld [vmem:[%s116 + $0xc8] sm:$0xff]
        %v161 = vld [vmem:[%s116 + $0xd0] sm:$0xff]
        %v162 = vld [vmem:[%s116 + $0xd8] sm:$0xff]
        %v163 = vld [vmem:[%s116 + $0xe0] sm:$0xff]
        %v164 = vld [vmem:[%s116 + $0xe8] sm:$0xff]
        %v165 = vld [vmem:[%s116 + $0xf0] sm:$0xff]
        %v166 = vld [vmem:[%s116 + $0xf8] sm:$0xff]
        %v167 = vld [vmem:[%s116 + $0x100] sm:$0xff]
        %v168 = vld [vmem:[%s116 + $0x108] sm:$0xff]
        %v169 = vld [vmem:[%s116 + $0x110] sm:$0xff]
        %v170 = vld [vmem:[%s116 + $0x118] sm:$0xff]
        %v171 = vld [vmem:[%s116 + $0x120] sm:$0xff]
        %v172 = vld [vmem:[%s116 + $0x128] sm:$0xff]
        %v173 = vld [vmem:[%s116 + $0x130] sm:$0xff]
        %v174 = vld [vmem:[%s116 + $0x138] sm:$0xff]
        %v175 = vld [vmem:[%s116 + $0x140] sm:$0xff]
        %v176 = vld [vmem:[%s116 + $0x148] sm:$0xff]
        %v177 = vld [vmem:[%s116 + $0x150] sm:$0xff]
        %v178 = vld [vmem:[%s116 + $0x158] sm:$0xff]
        %v179 = vld [vmem:[%s116 + $0x160] sm:$0xff]
        %v180 = vld [vmem:[%s116 + $0x168] sm:$0xff]
        %v181 = vld [vmem:[%s116 + $0x170] sm:$0xff]
        %v182 = vld [vmem:[%s116 + $0x178] sm:$0xff]
        %v183 = vld [vmem:[%s116 + $0x180] sm:$0xff]
        %v184 = vld [vmem:[%s116 + $0x188] sm:$0xff]
        %v185 = vld [vmem:[%s116 + $0x190] sm:$0xff]
        %v186 = vld [vmem:[%s116 + $0x198] sm:$0xff]
        %v187 = vld [vmem:[%s116 + $0x1a0] sm:$0xff]
        %v188 = vld [vmem:[%s116 + $0x1a8] sm:$0xff]
        %v189 = vld [vmem:[%s116 + $0x1b0] sm:$0xff]
        %v190 = vld [vmem:[%s116 + $0x1b8] sm:$0xff]
        %v191 = vld [vmem:[%s116 + $0x1c0] sm:$0xff]
        %v192 = vld [vmem:[%s116 + $0x1c8] sm:$0xff]
        %v193 = vld [vmem:[%s116 + $0x1d0] sm:$0xff]
        %v194 = vld [vmem:[%s116 + $0x1d8] sm:$0xff]
        %v195 = vld [vmem:[%s116 + $0x1e0] sm:$0xff]
        %v196 = vld [vmem:[%s116 + $0x1e8] sm:$0xff]
        %v197 = vld [vmem:[%s116 + $0x1f0] sm:$0xff]
        %v198 = vld [vmem:[%s116 + $0x1f8] sm:$0xff]
        %v199 = vld [vmem:[%s116 + $0x200] sm:$0xff]
        %v200 = vld [vmem:[%s116 + $0x208] sm:$0xff]
        %v201 = vld [vmem:[%s116 + $0x210] sm:$0xff]
        %v202 = vld [vmem:[%s116 + $0x218] sm:$0xff]
        %v203 = vld [vmem:[%s116 + $0x220] sm:$0xff]
        %v204 = vld [vmem:[%s116 + $0x228] sm:$0xff]
        %v205 = vld [vmem:[%s116 + $0x230] sm:$0xff]
        %v206 = vld [vmem:[%s116 + $0x238] sm:$0xff]
        %v207 = vld [vmem:[%s116 + $0x240] sm:$0xff]
        %v208 = vld [vmem:[%s116 + $0x248] sm:$0xff]
        %v209 = vld [vmem:[%s116 + $0x250] sm:$0xff]
        %v210 = vld [vmem:[%s116 + $0x258] sm:$0xff]
        %v211 = vld [vmem:[%s116 + $0x260] sm:$0xff]
        %v212 = vld [vmem:[%s116 + $0x268] sm:$0xff]
        %v213 = vld [vmem:[%s116 + $0x270] sm:$0xff]
        %v214 = vld [vmem:[%s116 + $0x278] sm:$0xff]
        %v215 = vld [vmem:[%s116 + $0x280] sm:$0xff]
        %v216 = vld [vmem:[%s116 + $0x288] sm:$0xff]
        %v217 = vld [vmem:[%s116 + $0x290] sm:$0xff]
        %v218 = vld [vmem:[%s116 + $0x298] sm:$0xff]
        %v219 = vld [vmem:[%s116 + $0x2a0] sm:$0xff]
        %v220 = vld [vmem:[%s116 + $0x2a8] sm:$0xff]
        %v221 = vld [vmem:[%s116 + $0x2b0] sm:$0xff]
        %v222 = vld [vmem:[%s116 + $0x2b8] sm:$0xff]
        %v223 = vld [vmem:[%s116 + $0x2c0] sm:$0xff]
        %v224 = vld [vmem:[%s116 + $0x2c8] sm:$0xff]
        %v225 = vld [vmem:[%s116 + $0x2d0] sm:$0xff]
        %v226 = vld [vmem:[%s116 + $0x2d8] sm:$0xff]
        %v227 = vld [vmem:[%s116 + $0x2e0] sm:$0xff]
        %v228 = vld [vmem:[%s116 + $0x2e8] sm:$0xff]
        %v229 = vld [vmem:[%s116 + $0x2f0] sm:$0xff]
        %v230 = vld [vmem:[%s116 + $0x2f8] sm:$0xff]
        %v231 = vld [vmem:[%s116 + $0x300] sm:$0xff]
        %v232 = vld [vmem:[%s116 + $0x308] sm:$0xff]
        %v233 = vld [vmem:[%s116 + $0x310] sm:$0xff]
        %v234 = vld [vmem:[%s116 + $0x318] sm:$0xff]
        %v235 = vld [vmem:[%s116 + $0x320] sm:$0xff]
        %v236 = vld [vmem:[%s116 + $0x328] sm:$0xff]
        %v237 = vld [vmem:[%s116 + $0x330] sm:$0xff]
        %v238 = vld [vmem:[%s116 + $0x338] sm:$0xff]
        %v239 = vld [vmem:[%s116 + $0x340] sm:$0xff]
        %v240 = vld [vmem:[%s116 + $0x348] sm:$0xff]
        %v241 = vld [vmem:[%s116 + $0x350] sm:$0xff]
        %v242 = vld [vmem:[%s116 + $0x358] sm:$0xff]
        %v243 = vld [vmem:[%s116 + $0x360] sm:$0xff]
        %v244 = vld [vmem:[%s116 + $0x368] sm:$0xff]
        %v245 = vld [vmem:[%s116 + $0x370] sm:$0xff]
        %v246 = vld [vmem:[%s116 + $0x378] sm:$0xff]
        %v247 = vld [vmem:[%s116 + $0x380] sm:$0xff]
        %v248 = vld [vmem:[%s116 + $0x388] sm:$0xff]
        %v249 = vld [vmem:[%s116 + $0x390] sm:$0xff]
        %v250 = vld [vmem:[%s116 + $0x398] sm:$0xff]
        %v251 = vld [vmem:[%s116 + $0x3a0] sm:$0xff]
        %v252 = vld [vmem:[%s116 + $0x3a8] sm:$0xff]
        %v253 = vld [vmem:[%s116 + $0x3b0] sm:$0xff]
        %v254 = vld [vmem:[%s116 + $0x3b8] sm:$0xff]
        %v255 = vld [vmem:[%s116 + $0x3c0] sm:$0xff]
        %v256 = vld [vmem:[%s116 + $0x3c8] sm:$0xff]
        %v257 = vld [vmem:[%s116 + $0x3d0] sm:$0xff]
        %v258 = vld [vmem:[%s116 + $0x3d8] sm:$0xff]
        %v259 = vld [vmem:[%s116 + $0x3e0] sm:$0xff]
        %v260 = vld [vmem:[%s116 + $0x3e8] sm:$0xff]
        %v261 = vld [vmem:[%s116 + $0x3f0] sm:$0xff]
        %v262 = vld [vmem:[%s116 + $0x3f8] sm:$0xff]
        %vm327 = vcmask 1040384
        %v328 = vrot.slane %v136, 7
        %v329 = vrot.slane %v138, 7
        %v330 = vsel %vm327, %v328, %v329
        %v331 = vrot.slane %v140, 7
        %v332 = vrot.slane %v142, 7
        %v333 = vsel %vm327, %v331, %v332
        %v334 = vrot.slane %v144, 7
        %v335 = vrot.slane %v146, 7
        %v336 = vsel %vm327, %v334, %v335
        %v337 = vrot.slane %v148, 7
        %v338 = vrot.slane %v150, 7
        %v339 = vsel %vm327, %v337, %v338
        %v340 = vrot.slane %v152, 7
        %v341 = vrot.slane %v154, 7
        %v342 = vsel %vm327, %v340, %v341
        %v343 = vrot.slane %v156, 7
        %v344 = vrot.slane %v158, 7
        %v345 = vsel %vm327, %v343, %v344
        %v346 = vrot.slane %v160, 7
        %v347 = vrot.slane %v162, 7
        %v348 = vsel %vm327, %v346, %v347
        %v349 = vrot.slane %v164, 7
        %v350 = vrot.slane %v166, 7
        %v351 = vsel %vm327, %v349, %v350
        %v352 = vrot.slane %v168, 7
        %v353 = vrot.slane %v170, 7
        %v354 = vsel %vm327, %v352, %v353
        %v355 = vrot.slane %v172, 7
        %v356 = vrot.slane %v174, 7
        %v357 = vsel %vm327, %v355, %v356
        %v358 = vrot.slane %v176, 7
        %v359 = vrot.slane %v178, 7
        %v360 = vsel %vm327, %v358, %v359
        %v361 = vrot.slane %v180, 7
        %v362 = vrot.slane %v182, 7
        %v363 = vsel %vm327, %v361, %v362
        %v364 = vrot.slane %v184, 7
        %v365 = vrot.slane %v186, 7
        %v366 = vsel %vm327, %v364, %v365
        %v367 = vrot.slane %v188, 7
        %v368 = vrot.slane %v190, 7
        %v369 = vsel %vm327, %v367, %v368
        %v370 = vrot.slane %v192, 7
        %v371 = vrot.slane %v194, 7
        %v372 = vsel %vm327, %v370, %v371
        %v373 = vrot.slane %v196, 7
        %v374 = vrot.slane %v198, 7
        %v375 = vsel %vm327, %v373, %v374
        %v376 = vrot.slane %v200, 7
        %v377 = vrot.slane %v202, 7
        %v378 = vsel %vm327, %v376, %v377
        %v379 = vrot.slane %v204, 7
        %v380 = vrot.slane %v206, 7
        %v381 = vsel %vm327, %v379, %v380
        %v382 = vrot.slane %v208, 7
        %v383 = vrot.slane %v210, 7
        %v384 = vsel %vm327, %v382, %v383
        %v385 = vrot.slane %v212, 7
        %v386 = vrot.slane %v214, 7
        %v387 = vsel %vm327, %v385, %v386
        %v388 = vrot.slane %v216, 7
        %v389 = vrot.slane %v218, 7
        %v390 = vsel %vm327, %v388, %v389
        %v391 = vrot.slane %v220, 7
        %v392 = vrot.slane %v222, 7
        %v393 = vsel %vm327, %v391, %v392
        %v394 = vrot.slane %v224, 7
        %v395 = vrot.slane %v226, 7
        %v396 = vsel %vm327, %v394, %v395
        %v397 = vrot.slane %v228, 7
        %v398 = vrot.slane %v230, 7
        %v399 = vsel %vm327, %v397, %v398
        %v400 = vrot.slane %v232, 7
        %v401 = vrot.slane %v234, 7
        %v402 = vsel %vm327, %v400, %v401
        %v403 = vrot.slane %v236, 7
        %v404 = vrot.slane %v238, 7
        %v405 = vsel %vm327, %v403, %v404
        %v406 = vrot.slane %v240, 7
        %v407 = vrot.slane %v242, 7
        %v408 = vsel %vm327, %v406, %v407
        %v409 = vrot.slane %v244, 7
        %v410 = vrot.slane %v246, 7
        %v411 = vsel %vm327, %v409, %v410
        %v412 = vrot.slane %v248, 7
        %v413 = vrot.slane %v250, 7
        %v414 = vsel %vm327, %v412, %v413
        %v415 = vrot.slane %v252, 7
        %v416 = vrot.slane %v254, 7
        %v417 = vsel %vm327, %v415, %v416
        %v418 = vrot.slane %v256, 7
        %v419 = vrot.slane %v258, 7
        %v420 = vsel %vm327, %v418, %v419
        %v421 = vrot.slane %v260, 7
        %v422 = vrot.slane %v262, 7
        %v423 = vsel %vm327, %v421, %v422
        %v488 = vsel %vm327, -inf, %v328
        %v489 = vsel %vm327, -inf, %v331
        %v490 = vsel %vm327, -inf, %v334
        %v491 = vsel %vm327, -inf, %v337
        %v492 = vsel %vm327, -inf, %v340
        %v493 = vsel %vm327, -inf, %v343
        %v494 = vsel %vm327, -inf, %v346
        %v495 = vsel %vm327, -inf, %v349
        %v496 = vsel %vm327, -inf, %v352
        %v497 = vsel %vm327, -inf, %v355
        %v498 = vsel %vm327, -inf, %v358
        %v499 = vsel %vm327, -inf, %v361
        %v500 = vsel %vm327, -inf, %v364
        %v501 = vsel %vm327, -inf, %v367
        %v502 = vsel %vm327, -inf, %v370
        %v503 = vsel %vm327, -inf, %v373
        %v504 = vsel %vm327, -inf, %v376
        %v505 = vsel %vm327, -inf, %v379
        %v506 = vsel %vm327, -inf, %v382
        %v507 = vsel %vm327, -inf, %v385
        %v508 = vsel %vm327, -inf, %v388
        %v509 = vsel %vm327, -inf, %v391
        %v510 = vsel %vm327, -inf, %v394
        %v511 = vsel %vm327, -inf, %v397
        %v512 = vsel %vm327, -inf, %v400
        %v513 = vsel %vm327, -inf, %v403
        %v514 = vsel %vm327, -inf, %v406
        %v515 = vsel %vm327, -inf, %v409
        %v516 = vsel %vm327, -inf, %v412
        %v517 = vsel %vm327, -inf, %v415
        %v518 = vsel %vm327, -inf, %v418
        %v519 = vsel %vm327, -inf, %v421
        %v520 = vmax.f32 %v135, %v136
        %v521 = vmax.f32 %v137, %v138
        %v522 = vmax.f32 %v139, %v140
        %v523 = vmax.f32 %v141, %v142
        %v524 = vmax.f32 %v143, %v144
        %v525 = vmax.f32 %v145, %v146
        %v526 = vmax.f32 %v147, %v148
        %v527 = vmax.f32 %v149, %v150
        %v528 = vmax.f32 %v151, %v152
        %v529 = vmax.f32 %v153, %v154
        %v530 = vmax.f32 %v155, %v156
        %v531 = vmax.f32 %v157, %v158
        %v532 = vmax.f32 %v159, %v160
        %v533 = vmax.f32 %v161, %v162
        %v534 = vmax.f32 %v163, %v164
        %v535 = vmax.f32 %v165, %v166
        %v536 = vmax.f32 %v167, %v168
        %v537 = vmax.f32 %v169, %v170
        %v538 = vmax.f32 %v171, %v172
        %v539 = vmax.f32 %v173, %v174
        %v540 = vmax.f32 %v175, %v176
        %v541 = vmax.f32 %v177, %v178
        %v542 = vmax.f32 %v179, %v180
        %v543 = vmax.f32 %v181, %v182
        %v544 = vmax.f32 %v183, %v184
        %v545 = vmax.f32 %v185, %v186
        %v546 = vmax.f32 %v187, %v188
        %v547 = vmax.f32 %v189, %v190
        %v548 = vmax.f32 %v191, %v192
        %v549 = vmax.f32 %v193, %v194
        %v550 = vmax.f32 %v195, %v196
        %v551 = vmax.f32 %v197, %v198
        %v552 = vmax.f32 %v199, %v200
        %v553 = vmax.f32 %v201, %v202
        %v554 = vmax.f32 %v203, %v204
        %v555 = vmax.f32 %v205, %v206
        %v556 = vmax.f32 %v207, %v208
        %v557 = vmax.f32 %v209, %v210
        %v558 = vmax.f32 %v211, %v212
        %v559 = vmax.f32 %v213, %v214
        %v560 = vmax.f32 %v215, %v216
        %v561 = vmax.f32 %v217, %v218
        %v562 = vmax.f32 %v219, %v220
        %v563 = vmax.f32 %v221, %v222
        %v564 = vmax.f32 %v223, %v224
        %v565 = vmax.f32 %v225, %v226
        %v566 = vmax.f32 %v227, %v228
        %v567 = vmax.f32 %v229, %v230
        %v568 = vmax.f32 %v231, %v232
        %v569 = vmax.f32 %v233, %v234
        %v570 = vmax.f32 %v235, %v236
        %v571 = vmax.f32 %v237, %v238
        %v572 = vmax.f32 %v239, %v240
        %v573 = vmax.f32 %v241, %v242
        %v574 = vmax.f32 %v243, %v244
        %v575 = vmax.f32 %v245, %v246
        %v576 = vmax.f32 %v247, %v248
        %v577 = vmax.f32 %v249, %v250
        %v578 = vmax.f32 %v251, %v252
        %v579 = vmax.f32 %v253, %v254
        %v580 = vmax.f32 %v255, %v256
        %v581 = vmax.f32 %v257, %v258
        %v582 = vmax.f32 %v259, %v260
        %v583 = vmax.f32 %v261, %v262
        %v584 = vmax.f32 %v520, %v488
        %v585 = vmax.f32 %v521, %v330
        %v586 = vmax.f32 %v522, %v489
        %v587 = vmax.f32 %v523, %v333
        %v588 = vmax.f32 %v524, %v490
        %v589 = vmax.f32 %v525, %v336
        %v590 = vmax.f32 %v526, %v491
        %v591 = vmax.f32 %v527, %v339
        %v592 = vmax.f32 %v528, %v492
        %v593 = vmax.f32 %v529, %v342
        %v594 = vmax.f32 %v530, %v493
        %v595 = vmax.f32 %v531, %v345
        %v596 = vmax.f32 %v532, %v494
        %v597 = vmax.f32 %v533, %v348
        %v598 = vmax.f32 %v534, %v495
        %v599 = vmax.f32 %v535, %v351
        %v600 = vmax.f32 %v536, %v496
        %v601 = vmax.f32 %v537, %v354
        %v602 = vmax.f32 %v538, %v497
        %v603 = vmax.f32 %v539, %v357
        %v604 = vmax.f32 %v540, %v498
        %v605 = vmax.f32 %v541, %v360
        %v606 = vmax.f32 %v542, %v499
        %v607 = vmax.f32 %v543, %v363
        %v608 = vmax.f32 %v544, %v500
        %v609 = vmax.f32 %v545, %v366
        %v610 = vmax.f32 %v546, %v501
        %v611 = vmax.f32 %v547, %v369
        %v612 = vmax.f32 %v548, %v502
        %v613 = vmax.f32 %v549, %v372
        %v614 = vmax.f32 %v550, %v503
        %v615 = vmax.f32 %v551, %v375
        %v616 = vmax.f32 %v552, %v504
        %v617 = vmax.f32 %v553, %v378
        %v618 = vmax.f32 %v554, %v505
        %v619 = vmax.f32 %v555, %v381
        %v620 = vmax.f32 %v556, %v506
        %v621 = vmax.f32 %v557, %v384
        %v622 = vmax.f32 %v558, %v507
        %v623 = vmax.f32 %v559, %v387
        %v624 = vmax.f32 %v560, %v508
        %v625 = vmax.f32 %v561, %v390
        %v626 = vmax.f32 %v562, %v509
        %v627 = vmax.f32 %v563, %v393
        %v628 = vmax.f32 %v564, %v510
        %v629 = vmax.f32 %v565, %v396
        %v630 = vmax.f32 %v566, %v511
        %v631 = vmax.f32 %v567, %v399
        %v632 = vmax.f32 %v568, %v512
        %v633 = vmax.f32 %v569, %v402
        %v634 = vmax.f32 %v570, %v513
        %v635 = vmax.f32 %v571, %v405
        %v636 = vmax.f32 %v572, %v514
        %v637 = vmax.f32 %v573, %v408
        %v638 = vmax.f32 %v574, %v515
        %v639 = vmax.f32 %v575, %v411
        %v640 = vmax.f32 %v576, %v516
        %v641 = vmax.f32 %v577, %v414
        %v642 = vmax.f32 %v578, %v517
        %v643 = vmax.f32 %v579, %v417
        %v644 = vmax.f32 %v580, %v518
        %v645 = vmax.f32 %v581, %v420
        %v646 = vmax.f32 %v582, %v519
        %v647 = vmax.f32 %v583, %v423
        %v648 = vmax.f32 %v584, %v586
        %v649 = vmax.f32 %v585, %v587
        %v650 = vmax.f32 %v588, %v590
        %v651 = vmax.f32 %v589, %v591
        %v652 = vmax.f32 %v592, %v594
        %v653 = vmax.f32 %v593, %v595
        %v654 = vmax.f32 %v596, %v598
        %v655 = vmax.f32 %v597, %v599
        %v656 = vmax.f32 %v600, %v602
        %v657 = vmax.f32 %v601, %v603
        %v658 = vmax.f32 %v604, %v606
        %v659 = vmax.f32 %v605, %v607
        %v660 = vmax.f32 %v608, %v610
        %v661 = vmax.f32 %v609, %v611
        %v662 = vmax.f32 %v612, %v614
        %v663 = vmax.f32 %v613, %v615
        %v664 = vmax.f32 %v616, %v618
        %v665 = vmax.f32 %v617, %v619
        %v666 = vmax.f32 %v620, %v622
        %v667 = vmax.f32 %v621, %v623
        %v668 = vmax.f32 %v624, %v626
        %v669 = vmax.f32 %v625, %v627
        %v670 = vmax.f32 %v628, %v630
        %v671 = vmax.f32 %v629, %v631
        %v672 = vmax.f32 %v632, %v634
        %v673 = vmax.f32 %v633, %v635
        %v674 = vmax.f32 %v636, %v638
        %v675 = vmax.f32 %v637, %v639
        %v676 = vmax.f32 %v640, %v642
        %v677 = vmax.f32 %v641, %v643
        %v678 = vmax.f32 %v644, %v646
        %v679 = vmax.f32 %v645, %v647
        %v680 = vmax.f32 %v650, %v586
        %v681 = vmax.f32 %v651, %v587
        %v682 = vmax.f32 %v652, %v590
        %v683 = vmax.f32 %v653, %v591
        %v684 = vmax.f32 %v654, %v594
        %v685 = vmax.f32 %v655, %v595
        %v686 = vmax.f32 %v656, %v598
        %v687 = vmax.f32 %v657, %v599
        %v688 = vmax.f32 %v658, %v602
        %v689 = vmax.f32 %v659, %v603
        %v690 = vmax.f32 %v660, %v606
        %v691 = vmax.f32 %v661, %v607
        %v692 = vmax.f32 %v662, %v610
        %v693 = vmax.f32 %v663, %v611
        %v694 = vmax.f32 %v664, %v614
        %v695 = vmax.f32 %v665, %v615
        %v696 = vmax.f32 %v666, %v618
        %v697 = vmax.f32 %v667, %v619
        %v698 = vmax.f32 %v668, %v622
        %v699 = vmax.f32 %v669, %v623
        %v700 = vmax.f32 %v670, %v626
        %v701 = vmax.f32 %v671, %v627
        %v702 = vmax.f32 %v672, %v630
        %v703 = vmax.f32 %v673, %v631
        %v704 = vmax.f32 %v674, %v634
        %v705 = vmax.f32 %v675, %v635
        %v706 = vmax.f32 %v676, %v638
        %v707 = vmax.f32 %v677, %v639
        %v708 = vmax.f32 %v678, %v642
        %v709 = vmax.f32 %v679, %v643
        %v710 = vpack.c.bf16 %v649, %v648
        %v711 = vpack.c.bf16 %v681, %v680
        %v712 = vpack.c.bf16 %v683, %v682
        %v713 = vpack.c.bf16 %v685, %v684
        %v714 = vpack.c.bf16 %v687, %v686
        %v715 = vpack.c.bf16 %v689, %v688
        %v716 = vpack.c.bf16 %v691, %v690
        %v717 = vpack.c.bf16 %v693, %v692
        %v718 = vpack.c.bf16 %v695, %v694
        %v719 = vpack.c.bf16 %v697, %v696
        %v720 = vpack.c.bf16 %v699, %v698
        %v721 = vpack.c.bf16 %v701, %v700
        %v722 = vpack.c.bf16 %v703, %v702
        %v723 = vpack.c.bf16 %v705, %v704
        %v724 = vpack.c.bf16 %v707, %v706
        %v725 = vpack.c.bf16 %v709, %v708
        %v742 = vunpack.c.l.b16 %v710
        %v743 = vunpack.c.h.b16 %v710
        %v744 = vunpack.c.l.b16 %v711
        %v745 = vunpack.c.h.b16 %v711
        %v746 = vunpack.c.l.b16 %v712
        %v747 = vunpack.c.h.b16 %v712
        %v748 = vunpack.c.l.b16 %v713
        %v749 = vunpack.c.h.b16 %v713
        %v750 = vunpack.c.l.b16 %v714
        %v751 = vunpack.c.h.b16 %v714
        %v752 = vunpack.c.l.b16 %v715
        %v753 = vunpack.c.h.b16 %v715
        %v754 = vunpack.c.l.b16 %v716
        %v755 = vunpack.c.h.b16 %v716
        %v756 = vunpack.c.l.b16 %v717
        %v757 = vunpack.c.h.b16 %v717
        %v758 = vunpack.c.l.b16 %v718
        %v759 = vunpack.c.h.b16 %v718
        %v760 = vunpack.c.l.b16 %v719
        %v761 = vunpack.c.h.b16 %v719
        %v762 = vunpack.c.l.b16 %v720
        %v763 = vunpack.c.h.b16 %v720
        %v764 = vunpack.c.l.b16 %v721
        %v765 = vunpack.c.h.b16 %v721
        %v766 = vunpack.c.l.b16 %v722
        %v767 = vunpack.c.h.b16 %v722
        %v768 = vunpack.c.l.b16 %v723
        %v769 = vunpack.c.h.b16 %v723
        %v770 = vunpack.c.l.b16 %v724
        %v771 = vunpack.c.h.b16 %v724
        %v772 = vunpack.c.l.b16 %v725
        %v773 = vunpack.c.h.b16 %v725
        %v774 = vpack.c.b16 %v742, %v742
        %v775 = vpack.c.b16 %v743, %v743
        %v776 = vpack.c.b16 %v744, %v744
        %v777 = vpack.c.b16 %v745, %v745
        %v778 = vpack.c.b16 %v746, %v746
        %v779 = vpack.c.b16 %v747, %v747
        %v780 = vpack.c.b16 %v748, %v748
        %v781 = vpack.c.b16 %v749, %v749
        %v782 = vpack.c.b16 %v750, %v750
        %v783 = vpack.c.b16 %v751, %v751
        %v784 = vpack.c.b16 %v752, %v752
        %v785 = vpack.c.b16 %v753, %v753
        %v786 = vpack.c.b16 %v754, %v754
        %v787 = vpack.c.b16 %v755, %v755
        %v788 = vpack.c.b16 %v756, %v756
        %v789 = vpack.c.b16 %v757, %v757
        %v790 = vpack.c.b16 %v758, %v758
        %v791 = vpack.c.b16 %v759, %v759
        %v792 = vpack.c.b16 %v760, %v760
        %v793 = vpack.c.b16 %v761, %v761
        %v794 = vpack.c.b16 %v762, %v762
        %v795 = vpack.c.b16 %v763, %v763
        %v796 = vpack.c.b16 %v764, %v764
        %v797 = vpack.c.b16 %v765, %v765
        %v798 = vpack.c.b16 %v766, %v766
        %v799 = vpack.c.b16 %v767, %v767
        %v800 = vpack.c.b16 %v768, %v768
        %v801 = vpack.c.b16 %v769, %v769
        %v802 = vpack.c.b16 %v770, %v770
        %v803 = vpack.c.b16 %v771, %v771
        %v804 = vpack.c.b16 %v772, %v772
        %v805 = vpack.c.b16 %v773, %v773
        %838 = vst [vmem:[%s134] sm:$0xf] %v774
        %839 = vst [vmem:[%s134 + $0x4] sm:$0xf] %v775
        %840 = vst [vmem:[%s134 + $0x8] sm:$0xf] %v776
        %841 = vst [vmem:[%s134 + $0xc] sm:$0xf] %v777
        %842 = vst [vmem:[%s134 + $0x10] sm:$0xf] %v778
        %843 = vst [vmem:[%s134 + $0x14] sm:$0xf] %v779
        %844 = vst [vmem:[%s134 + $0x18] sm:$0xf] %v780
        %845 = vst [vmem:[%s134 + $0x1c] sm:$0xf] %v781
        %846 = vst [vmem:[%s134 + $0x20] sm:$0xf] %v782
        %847 = vst [vmem:[%s134 + $0x24] sm:$0xf] %v783
        %848 = vst [vmem:[%s134 + $0x28] sm:$0xf] %v784
        %849 = vst [vmem:[%s134 + $0x2c] sm:$0xf] %v785
        %850 = vst [vmem:[%s134 + $0x30] sm:$0xf] %v786
        %851 = vst [vmem:[%s134 + $0x34] sm:$0xf] %v787
        %852 = vst [vmem:[%s134 + $0x38] sm:$0xf] %v788
        %853 = vst [vmem:[%s134 + $0x3c] sm:$0xf] %v789
        %854 = vst [vmem:[%s134 + $0x40] sm:$0xf] %v790
        %855 = vst [vmem:[%s134 + $0x44] sm:$0xf] %v791
        %856 = vst [vmem:[%s134 + $0x48] sm:$0xf] %v792
        %857 = vst [vmem:[%s134 + $0x4c] sm:$0xf] %v793
        %858 = vst [vmem:[%s134 + $0x50] sm:$0xf] %v794
        %859 = vst [vmem:[%s134 + $0x54] sm:$0xf] %v795
        %860 = vst [vmem:[%s134 + $0x58] sm:$0xf] %v796
        %861 = vst [vmem:[%s134 + $0x5c] sm:$0xf] %v797
        %862 = vst [vmem:[%s134 + $0x60] sm:$0xf] %v798
        %863 = vst [vmem:[%s134 + $0x64] sm:$0xf] %v799
        %864 = vst [vmem:[%s134 + $0x68] sm:$0xf] %v800
        %865 = vst [vmem:[%s134 + $0x6c] sm:$0xf] %v801
        %866 = vst [vmem:[%s134 + $0x70] sm:$0xf] %v802
        %867 = vst [vmem:[%s134 + $0x74] sm:$0xf] %v803
        %868 = vst [vmem:[%s134 + $0x78] sm:$0xf] %v804
        %869 = vst [vmem:[%s134 + $0x7c] sm:$0xf] %v805
        %s870 = sand.u32 %s52, 1
        %s871 = scalar_lea.sflag [#allocation4], %s870
        %s872 = sand.u32 %s52, 1
        %s873 = smul.addr %s872, 128
        %s874 = scalar_lea.vmem [#allocation5], %s873
        // Predicated region
        $region29: #{tpu_custom_call.1} parent=23 // pred_check
          %p875 = pneg %p62
        $region30: #{tpu_custom_call.1} parent=23 // pred_check_branch
          %877 = sbr.rel (%p875) target = $region32
        $region31: #{tpu_custom_call.1} parent=23 // pred_region
          %s879 = ssub.s32 2048, 2048
          %880 = vsyncadd %s871, %s879
          %s881 = smul.addr %s18, 32
          %s882 = smul.addr %s881, 64
          %s883 = scalar_lea.hbm %s1, %s882
          %s884 = sshll.u32 %s874, 4
          %s885 = int_to_ptr.vmem [resolvable:$true] %s884
          %890 = dma.vmem_to_hbm [thread:$0]  %s885, 2048, %s883, %s871, 64, 64, 4
        $region32: #{tpu_custom_call.1} parent=23 // pred_fallthru
          _
      $region24: #{tpu_custom_call.1} parent=5 // pred_fallthru
        _
      %p891 = scmp.le.s32.totalorder 2, %s13
      // Predicated region
      $region33: #{tpu_custom_call.1} parent=5 // pred_check
        %p892 = pneg %p891
      $region34: #{tpu_custom_call.1} parent=5 // pred_check_branch
        %894 = sbr.rel (%p892) target = $region36
      $region35: #{tpu_custom_call.1} parent=5 // pred_region
        %s895 = ssub.s32 %s13, 2
        // Predicated region
        $region37: #{tpu_custom_call.1} parent=35 // pred_check
          %p896 = pneg %p68
        $region38: #{tpu_custom_call.1} parent=35 // pred_check_branch
          %898 = sbr.rel (%p896) target = $region40
        $region39: #{tpu_custom_call.1} parent=35 // pred_region
          %s899 = sand.u32 %s53, 1
          %s900 = scalar_lea.sflag [#allocation4], %s899
          %s901 = sand.u32 %s53, 1
          %s902 = smul.addr %s901, 128
          %s903 = scalar_lea.vmem [#allocation5], %s902
          %904 = dma.done %s900, 2048
        $region40: #{tpu_custom_call.1} parent=35 // pred_fallthru
          _
      $region36: #{tpu_custom_call.1} parent=5 // pred_fallthru
        _
    $region6: #{tpu_custom_call.1} parent=1 // loop_footer
      %s17 = sadd.s32 1, %s13
    $region7: #{tpu_custom_call.1} parent=1 // loop_footer_branch
      %12 = sbr.rel target = $region3
    $region8: #{tpu_custom_call.1} parent=1 // loop_exit
      _
    %905 = vsyncpa [#allocation3], 1
    %s906 = scalar_lea.sflag [#allocation3], 1
    %907 = vsyncpa %s906, 1
    %908 = vsyncpa [#allocation4], 1
    %s909 = scalar_lea.sflag [#allocation4], 1
    %910 = vsyncpa %s909, 1

</llo_original>
